<compile_context>
chip_gen: v7x
topology: tpu7x:2x2x1
jax: 0.10.0
libtpu: 0.0.40
codegen_flags: <defaults>
</compile_context>

<pallas_src>
import functools

import jax
import jax.numpy as jnp
from jax.experimental import pallas as pl


def hea_kernel(x_ref, wcat_ref, bcat_ref, w2_ref, b2_ref, o_ref, *, T, E, H1, H2):
    outs = []
    for t in range(T):  # T == 2: fully unrolled; the two task chains are independent.
        x = x_ref[t]                                                     # (B, D_in) bf16

        # Fused gate + layer-1 matmul: lanes [0:E*H1) = layer-1, [E*H1:) = gate logits
        # replicated H2 times per expert (Gexp folded into the RHS on the wrapper side).
        z = jnp.dot(x, wcat_ref[t], preferred_element_type=jnp.float32) + bcat_ref[t]

        h = jnp.maximum(z[:, :E * H1], 0.0)                              # (B, E*H1) f32
        gl = z[:, E * H1:]                                               # (B, E*H2) f32

        # Softmax over experts on the replicated lanes.  max over replicated lanes is
        # exact; the lane sum over-counts by H2, so rescale the reciprocal by H2.
        g = jnp.exp(gl - jnp.max(gl, axis=-1, keepdims=True))
        g = g * (pl.reciprocal(jnp.sum(g, axis=-1, keepdims=True), approx=True) * H2)

        # Layer 2: block-diagonal fused matmul (B, E*H1) @ (E*H1, E*H2), ReLU.
        y = jnp.dot(h.astype(jnp.bfloat16), w2_ref[t],
                    preferred_element_type=jnp.float32) + b2_ref[t]
        y = jnp.maximum(y, 0.0)                                          # (B, E*H2)

        # Gate mix + segmented sum over the E expert blocks (VPU only, no MXU).
        z2 = g * y                                                       # (B, E*H2)
        acc = z2[:, 0:H2]
        for e in range(1, E):
            acc = acc + z2[:, e * H2:(e + 1) * H2]
        outs.append(acc)                                                 # (B, H2)

    # Lane-dense ConvertNet output: concat of per-task outputs, stored once.
    o_ref[...] = jnp.concatenate(outs, axis=-1)                          # (B, T*H2)


def convertnet_hea_forward(x, Wg, bg, W1, b1, W2, b2):
    """x [T,B,D_in]; Wg [T,D_in,E]; bg [T,1,E]; W1 [T,E,D_in,H1]; b1 [T,E,1,H1];
    W2 [T,E,H1,H2]; b2 [T,E,1,H2].  Returns ConvertNet output [B, T*H2]."""
    T, B, D_in = x.shape
    E = Wg.shape[-1]
    H1 = W1.shape[-1]
    H2 = W2.shape[-1]
    f32, bf16 = jnp.float32, jnp.bfloat16

    # ---- wrapper-side weight prep (all lane fusion done here, once) ----
    # Layer 1: (T, E, D_in, H1) -> (T, D_in, E*H1); column e*H1+h holds W1[t, e, :, h].
    W1cat = jnp.transpose(W1, (0, 2, 1, 3)).reshape(T, D_in, E * H1)
    b1cat = b1.reshape(T, 1, E * H1)
    # Gate weights with Gexp folded in: column e*H2+o holds Wg[t, :, e].
    Wg_exp = jnp.repeat(Wg, H2, axis=-1)                                 # (T, D_in, E*H2)
    bg_exp = jnp.repeat(bg, H2, axis=-1)                                 # (T, 1,    E*H2)
    # Fused gate+layer-1 RHS: [layer-1 (E*H1 lanes) | gate (E*H2 lanes)].
    Wcat = jnp.concatenate([W1cat, Wg_exp], axis=-1).astype(bf16)        # (T, D_in, 192)
    bcat = jnp.concatenate([b1cat, bg_exp], axis=-1).astype(f32)         # (T, 1,    192)
    # Layer 2: block-diagonal (T, E*H1, E*H2); expert e's (H1,H2) block on the diagonal.
    eye_e = jnp.eye(E, dtype=W2.dtype)
    W2bd = (W2[:, :, :, None, :] * eye_e[None, :, None, :, None]
            ).reshape(T, E * H1, E * H2).astype(bf16)
    b2cat = b2.reshape(T, 1, E * H2).astype(f32)

    kernel = functools.partial(hea_kernel, T=T, E=E, H1=H1, H2=H2)
    # Single invocation (grid=()): all operands are loaded whole into VMEM once,
    # which removes the per-grid-step DMA/launch overhead that dominated before.
    out = pl.pallas_call(
        kernel,
        out_shape=jax.ShapeDtypeStruct((B, T * H2), f32),
    )(x.astype(bf16), Wcat, bcat, W2bd, b2cat)
    return out


def hea_reference(x, Wg, bg, W1, b1, W2, b2):
    # Pure-JAX reference of the PyTorch HEA forward (eval mode, dropout no-op).
    g = jax.nn.softmax(jnp.einsum('tbi,tie->tbe', x, Wg) + bg, axis=-1)   # (T,B,E)
    h = jnp.maximum(jnp.einsum('tbi,teio->tebo', x, W1) + b1, 0.0)        # (T,E,B,H1)
    y = jnp.maximum(jnp.einsum('tebh,teho->tebo', h, W2) + b2, 0.0)       # (T,E,B,H2)
    return jnp.einsum('tbe,tebd->tbd', g, y)                              # (T,B,H2)


if __name__ == "__main__":
    # ple_arch = (share_expt_num=2, spcf_expt_num=2, expt_arch=[32, 16], task_num=2)
    T, S, P = 2, 2, 2
    E = S + P
    D_in, H1, H2 = 32, 32, 16
    B = 8

    key = jax.random.PRNGKey(0)
    ks = jax.random.split(key, 12)

    # Inputs: x_list of T tensors [B, D_in], stacked task-major.
    x = jax.random.normal(ks[0], (T, B, D_in), jnp.float32)

    # Gate nets: T x Linear(D_in -> E).
    Wg = 0.1 * jax.random.normal(ks[1], (T, D_in, E), jnp.float32)
    bg = 0.1 * jax.random.normal(ks[2], (T, 1, E), jnp.float32)

    # Shared experts (S MLPs) and task-specific experts (T x P MLPs), arch [H1, H2].
    sh_w1 = 0.1 * jax.random.normal(ks[3], (S, D_in, H1), jnp.float32)
    sh_b1 = 0.1 * jax.random.normal(ks[4], (S, 1, H1), jnp.float32)
    sh_w2 = 0.1 * jax.random.normal(ks[5], (S, H1, H2), jnp.float32)
    sh_b2 = 0.1 * jax.random.normal(ks[6], (S, 1, H2), jnp.float32)

    sp_w1 = 0.1 * jax.random.normal(ks[7], (T, P, D_in, H1), jnp.float32)
    sp_b1 = 0.1 * jax.random.normal(ks[8], (T, P, 1, H1), jnp.float32)
    sp_w2 = 0.1 * jax.random.normal(ks[9], (T, P, H1, H2), jnp.float32)
    sp_b2 = 0.1 * jax.random.normal(ks[10], (T, P, 1, H2), jnp.float32)

    # Per-task expert stacks: shared experts first, then task-specific (torch.cat order).
    W1 = jnp.concatenate([jnp.broadcast_to(sh_w1, (T, S, D_in, H1)), sp_w1], axis=1)
    b1 = jnp.concatenate([jnp.broadcast_to(sh_b1, (T, S, 1, H1)), sp_b1], axis=1)
    W2 = jnp.concatenate([jnp.broadcast_to(sh_w2, (T, S, H1, H2)), sp_w2], axis=1)
    b2 = jnp.concatenate([jnp.broadcast_to(sh_b2, (T, S, 1, H2)), sp_b2], axis=1)

    out_cat = convertnet_hea_forward(x, Wg, bg, W1, b1, W2, b2)    # (B, T*H2)
    jax.block_until_ready(out_cat)

    ref = hea_reference(x, Wg, bg, W1, b1, W2, b2)                 # (T, B, H2)
    ref_cat = jnp.concatenate([ref[t] for t in range(T)], axis=-1) # ConvertNet concat

    assert out_cat.shape == (B, T * H2)
    # Tolerance covers bf16 MXU operands + the EUP approximate reciprocal in softmax.
    assert jnp.allclose(out_cat, ref_cat, atol=1e-2, rtol=1e-2), "mismatch vs reference"

    print("KERNEL_OK")
</pallas_src>

<mosaic_0001>
module attributes {stable_mosaic.version = 11 : i64} {
  func.func @hea_kernel(%arg0: memref<2x8x32xbf16, #tpu.memory_space<vmem>>, %arg1: memref<2x32x192xbf16, #tpu.memory_space<vmem>>, %arg2: memref<2x1x192xf32, #tpu.memory_space<vmem>>, %arg3: memref<2x128x64xbf16, #tpu.memory_space<vmem>>, %arg4: memref<2x1x64xf32, #tpu.memory_space<vmem>>, %arg5: memref<8x32xf32, #tpu.memory_space<vmem>>) attributes {dimension_semantics = [], scalar_prefetch = 0 : i64, scratch_operands = 0 : i64, tpu.core_type = #tpu.core_type<tc>} {
    %c0 = arith.constant 0 : index
    %c0_0 = arith.constant 0 : index
    %c0_1 = arith.constant 0 : index
    %0 = vector.load %arg0[%c0, %c0_0, %c0_1] : memref<2x8x32xbf16, #tpu.memory_space<vmem>>, vector<1x8x32xbf16>
    %1 = vector.shape_cast %0 : vector<1x8x32xbf16> to vector<8x32xbf16>
    %c0_2 = arith.constant 0 : index
    %c0_3 = arith.constant 0 : index
    %c0_4 = arith.constant 0 : index
    %2 = vector.load %arg1[%c0_2, %c0_3, %c0_4] : memref<2x32x192xbf16, #tpu.memory_space<vmem>>, vector<1x32x192xbf16>
    %3 = vector.shape_cast %2 : vector<1x32x192xbf16> to vector<32x192xbf16>
    %cst = arith.constant dense<0.000000e+00> : vector<8x192xf32>
    %4 = tpu.matmul %1, %3, %cst {dimension_numbers = #tpu.dot_dimension_numbers<[1], [0], [0], [1], [0, 0, 1, 1], [], []>} : vector<8x32xbf16>, vector<32x192xbf16>, vector<8x192xf32> -> vector<8x192xf32>
    %c0_5 = arith.constant 0 : index
    %c0_6 = arith.constant 0 : index
    %c0_7 = arith.constant 0 : index
    %5 = vector.load %arg2[%c0_5, %c0_6, %c0_7] : memref<2x1x192xf32, #tpu.memory_space<vmem>>, vector<1x1x192xf32>
    %6 = vector.shape_cast %5 : vector<1x1x192xf32> to vector<1x192xf32>
    %7 = vector.broadcast %6 : vector<1x192xf32> to vector<8x192xf32>
    %8 = arith.addf %4, %7 : vector<8x192xf32>
    %9 = vector.extract_strided_slice %8 {offsets = [0, 0], sizes = [8, 128], strides = [1, 1]} : vector<8x192xf32> to vector<8x128xf32>
    %cst_8 = arith.constant 0.000000e+00 : f32
    %10 = vector.broadcast %cst_8 : f32 to vector<8x128xf32>
    %11 = arith.maximumf %9, %10 : vector<8x128xf32>
    %12 = vector.extract_strided_slice %8 {offsets = [0, 128], sizes = [8, 64], strides = [1, 1]} : vector<8x192xf32> to vector<8x64xf32>
    %cst_9 = arith.constant dense<0xFF800000> : vector<8xf32>
    %13 = vector.multi_reduction <maximumf>, %12, %cst_9 [1] : vector<8x64xf32> to vector<8xf32>
    %14 = vector.shape_cast %13 : vector<8xf32> to vector<8x1xf32>
    %15 = vector.broadcast %14 : vector<8x1xf32> to vector<8x64xf32>
    %16 = arith.subf %12, %15 : vector<8x64xf32>
    %17 = math.exp %16 : vector<8x64xf32>
    %cst_10 = arith.constant dense<0.000000e+00> : vector<8xf32>
    %18 = vector.multi_reduction <add>, %17, %cst_10 [1] : vector<8x64xf32> to vector<8xf32>
    %19 = vector.shape_cast %18 : vector<8xf32> to vector<8x1xf32>
    %20 = tpu.reciprocal %19 {approx = true} : vector<8x1xf32> -> vector<8x1xf32>
    %cst_11 = arith.constant 1.600000e+01 : f32
    %21 = vector.broadcast %cst_11 : f32 to vector<8x1xf32>
    %22 = arith.mulf %20, %21 : vector<8x1xf32>
    %23 = vector.broadcast %22 : vector<8x1xf32> to vector<8x64xf32>
    %24 = arith.mulf %17, %23 : vector<8x64xf32>
    %25 = arith.truncf %11 : vector<8x128xf32> to vector<8x128xbf16>
    %c0_12 = arith.constant 0 : index
    %c0_13 = arith.constant 0 : index
    %c0_14 = arith.constant 0 : index
    %26 = vector.load %arg3[%c0_12, %c0_13, %c0_14] : memref<2x128x64xbf16, #tpu.memory_space<vmem>>, vector<1x128x64xbf16>
    %27 = vector.shape_cast %26 : vector<1x128x64xbf16> to vector<128x64xbf16>
    %cst_15 = arith.constant dense<0.000000e+00> : vector<8x64xf32>
    %28 = tpu.matmul %25, %27, %cst_15 {dimension_numbers = #tpu.dot_dimension_numbers<[1], [0], [0], [1], [0, 0, 1, 1], [], []>} : vector<8x128xbf16>, vector<128x64xbf16>, vector<8x64xf32> -> vector<8x64xf32>
    %c0_16 = arith.constant 0 : index
    %c0_17 = arith.constant 0 : index
    %c0_18 = arith.constant 0 : index
    %29 = vector.load %arg4[%c0_16, %c0_17, %c0_18] : memref<2x1x64xf32, #tpu.memory_space<vmem>>, vector<1x1x64xf32>
    %30 = vector.shape_cast %29 : vector<1x1x64xf32> to vector<1x64xf32>
    %31 = vector.broadcast %30 : vector<1x64xf32> to vector<8x64xf32>
    %32 = arith.addf %28, %31 : vector<8x64xf32>
    %cst_19 = arith.constant 0.000000e+00 : f32
    %33 = vector.broadcast %cst_19 : f32 to vector<8x64xf32>
    %34 = arith.maximumf %32, %33 : vector<8x64xf32>
    %35 = arith.mulf %24, %34 : vector<8x64xf32>
    %36 = vector.extract_strided_slice %35 {offsets = [0, 0], sizes = [8, 16], strides = [1, 1]} : vector<8x64xf32> to vector<8x16xf32>
    %37 = vector.extract_strided_slice %35 {offsets = [0, 16], sizes = [8, 16], strides = [1, 1]} : vector<8x64xf32> to vector<8x16xf32>
    %38 = arith.addf %36, %37 : vector<8x16xf32>
    %39 = vector.extract_strided_slice %35 {offsets = [0, 32], sizes = [8, 16], strides = [1, 1]} : vector<8x64xf32> to vector<8x16xf32>
    %40 = arith.addf %38, %39 : vector<8x16xf32>
    %41 = vector.extract_strided_slice %35 {offsets = [0, 48], sizes = [8, 16], strides = [1, 1]} : vector<8x64xf32> to vector<8x16xf32>
    %42 = arith.addf %40, %41 : vector<8x16xf32>
    %c1 = arith.constant 1 : index
    %c0_20 = arith.constant 0 : index
    %c0_21 = arith.constant 0 : index
    %43 = vector.load %arg0[%c1, %c0_20, %c0_21] : memref<2x8x32xbf16, #tpu.memory_space<vmem>>, vector<1x8x32xbf16>
    %44 = vector.shape_cast %43 : vector<1x8x32xbf16> to vector<8x32xbf16>
    %c1_22 = arith.constant 1 : index
    %c0_23 = arith.constant 0 : index
    %c0_24 = arith.constant 0 : index
    %45 = vector.load %arg1[%c1_22, %c0_23, %c0_24] : memref<2x32x192xbf16, #tpu.memory_space<vmem>>, vector<1x32x192xbf16>
    %46 = vector.shape_cast %45 : vector<1x32x192xbf16> to vector<32x192xbf16>
    %cst_25 = arith.constant dense<0.000000e+00> : vector<8x192xf32>
    %47 = tpu.matmul %44, %46, %cst_25 {dimension_numbers = #tpu.dot_dimension_numbers<[1], [0], [0], [1], [0, 0, 1, 1], [], []>} : vector<8x32xbf16>, vector<32x192xbf16>, vector<8x192xf32> -> vector<8x192xf32>
    %c1_26 = arith.constant 1 : index
    %c0_27 = arith.constant 0 : index
    %c0_28 = arith.constant 0 : index
    %48 = vector.load %arg2[%c1_26, %c0_27, %c0_28] : memref<2x1x192xf32, #tpu.memory_space<vmem>>, vector<1x1x192xf32>
    %49 = vector.shape_cast %48 : vector<1x1x192xf32> to vector<1x192xf32>
    %50 = vector.broadcast %49 : vector<1x192xf32> to vector<8x192xf32>
    %51 = arith.addf %47, %50 : vector<8x192xf32>
    %52 = vector.extract_strided_slice %51 {offsets = [0, 0], sizes = [8, 128], strides = [1, 1]} : vector<8x192xf32> to vector<8x128xf32>
    %cst_29 = arith.constant 0.000000e+00 : f32
    %53 = vector.broadcast %cst_29 : f32 to vector<8x128xf32>
    %54 = arith.maximumf %52, %53 : vector<8x128xf32>
    %55 = vector.extract_strided_slice %51 {offsets = [0, 128], sizes = [8, 64], strides = [1, 1]} : vector<8x192xf32> to vector<8x64xf32>
    %cst_30 = arith.constant dense<0xFF800000> : vector<8xf32>
    %56 = vector.multi_reduction <maximumf>, %55, %cst_30 [1] : vector<8x64xf32> to vector<8xf32>
    %57 = vector.shape_cast %56 : vector<8xf32> to vector<8x1xf32>
    %58 = vector.broadcast %57 : vector<8x1xf32> to vector<8x64xf32>
    %59 = arith.subf %55, %58 : vector<8x64xf32>
    %60 = math.exp %59 : vector<8x64xf32>
    %cst_31 = arith.constant dense<0.000000e+00> : vector<8xf32>
    %61 = vector.multi_reduction <add>, %60, %cst_31 [1] : vector<8x64xf32> to vector<8xf32>
    %62 = vector.shape_cast %61 : vector<8xf32> to vector<8x1xf32>
    %63 = tpu.reciprocal %62 {approx = true} : vector<8x1xf32> -> vector<8x1xf32>
    %cst_32 = arith.constant 1.600000e+01 : f32
    %64 = vector.broadcast %cst_32 : f32 to vector<8x1xf32>
    %65 = arith.mulf %63, %64 : vector<8x1xf32>
    %66 = vector.broadcast %65 : vector<8x1xf32> to vector<8x64xf32>
    %67 = arith.mulf %60, %66 : vector<8x64xf32>
    %68 = arith.truncf %54 : vector<8x128xf32> to vector<8x128xbf16>
    %c1_33 = arith.constant 1 : index
    %c0_34 = arith.constant 0 : index
    %c0_35 = arith.constant 0 : index
    %69 = vector.load %arg3[%c1_33, %c0_34, %c0_35] : memref<2x128x64xbf16, #tpu.memory_space<vmem>>, vector<1x128x64xbf16>
    %70 = vector.shape_cast %69 : vector<1x128x64xbf16> to vector<128x64xbf16>
    %cst_36 = arith.constant dense<0.000000e+00> : vector<8x64xf32>
    %71 = tpu.matmul %68, %70, %cst_36 {dimension_numbers = #tpu.dot_dimension_numbers<[1], [0], [0], [1], [0, 0, 1, 1], [], []>} : vector<8x128xbf16>, vector<128x64xbf16>, vector<8x64xf32> -> vector<8x64xf32>
    %c1_37 = arith.constant 1 : index
    %c0_38 = arith.constant 0 : index
    %c0_39 = arith.constant 0 : index
    %72 = vector.load %arg4[%c1_37, %c0_38, %c0_39] : memref<2x1x64xf32, #tpu.memory_space<vmem>>, vector<1x1x64xf32>
    %73 = vector.shape_cast %72 : vector<1x1x64xf32> to vector<1x64xf32>
    %74 = vector.broadcast %73 : vector<1x64xf32> to vector<8x64xf32>
    %75 = arith.addf %71, %74 : vector<8x64xf32>
    %cst_40 = arith.constant 0.000000e+00 : f32
    %76 = vector.broadcast %cst_40 : f32 to vector<8x64xf32>
    %77 = arith.maximumf %75, %76 : vector<8x64xf32>
    %78 = arith.mulf %67, %77 : vector<8x64xf32>
    %79 = vector.extract_strided_slice %78 {offsets = [0, 0], sizes = [8, 16], strides = [1, 1]} : vector<8x64xf32> to vector<8x16xf32>
    %80 = vector.extract_strided_slice %78 {offsets = [0, 16], sizes = [8, 16], strides = [1, 1]} : vector<8x64xf32> to vector<8x16xf32>
    %81 = arith.addf %79, %80 : vector<8x16xf32>
    %82 = vector.extract_strided_slice %78 {offsets = [0, 32], sizes = [8, 16], strides = [1, 1]} : vector<8x64xf32> to vector<8x16xf32>
    %83 = arith.addf %81, %82 : vector<8x16xf32>
    %84 = vector.extract_strided_slice %78 {offsets = [0, 48], sizes = [8, 16], strides = [1, 1]} : vector<8x64xf32> to vector<8x16xf32>
    %85 = arith.addf %83, %84 : vector<8x16xf32>
    %86 = tpu.concatenate %42, %85 in 1 : vector<8x16xf32>, vector<8x16xf32> -> vector<8x32xf32>
    %c0_41 = arith.constant 0 : index
    %c0_42 = arith.constant 0 : index
    %87 = vector.load %arg5[%c0_41, %c0_42] : memref<8x32xf32, #tpu.memory_space<vmem>>, vector<8x32xf32>
    tpu.vector_store %arg5[%c0_41, %c0_42], %86 {strides = array<i32>} : memref<8x32xf32, #tpu.memory_space<vmem>>, vector<8x32xf32>,
    return
  }
}

</mosaic_0001>

<llo_original>
// kernel: tpu_custom_call.1
$region0: #{tpu_custom_call.1}
  #allocation0 [shape = 'u32[]', space=smem, size = 0x4, offset = 0x4, fixed_abs, tag = 'smem constant byte address 0x4 - core index']
  #allocation1 [shape = 'u32[144,128]{1,0:T(1,128)}', space=vmem, size = 0x12000, scoped, tag = 'internal scratch']
  %s0 = inlined_call_operand.vmem [shape: bf16[2,8,32], index: 0, kind: input, shape index: {}]
  %s1 = inlined_call_operand.vmem [shape: bf16[2,32,192], index: 1, kind: input, shape index: {}]
  %s2 = inlined_call_operand.vmem [shape: f32[2,1,192], index: 2, kind: input, shape index: {}]
  %s3 = inlined_call_operand.vmem [shape: bf16[2,128,64], index: 3, kind: input, shape index: {}]
  %s4 = inlined_call_operand.vmem [shape: f32[2,1,64], index: 4, kind: input, shape index: {}]
  %s5 = inlined_call_operand.hbm [shape: f32[8,32], index: 5, kind: output, shape index: {}]
  %s6 = sld [smem:[#allocation0]]
  $region30: #{tpu_custom_call.1} parent=0
    _
  %s8 = ssub.s32 1, %s6
  %s9 = scalar_select 0, %s8, %s6
  $region1: #{tpu_custom_call.1} parent=0
    #allocation2 [shape = 'u8[4096]{0}', space=vmem, size = 0x1000, scoped, tag = 'output window, operand 0, single buffered']
    #allocation3 [shape = 's32[1]{0}', space=sflag, size = 0x4, scoped, tag = 'scoped memory for tpu_custom_call.1']
    %10 = vsyncpa [#allocation3], 0
    // Predicated region
    $region2: #{tpu_custom_call.1} parent=1 // pred_check
      _
    $region3: #{tpu_custom_call.1} parent=1 // pred_check_branch
      %12 = sbr.rel (0) target = $region5
    $region4: #{tpu_custom_call.1} parent=1 // pred_region
      _
    $region5: #{tpu_custom_call.1} parent=1 // pred_fallthru
      _
    // Predicated region
    $region6: #{tpu_custom_call.1} parent=1 // pred_check
      _
    $region7: #{tpu_custom_call.1} parent=1 // pred_check_branch
      %14 = sbr.rel (0) target = $region9
    $region8: #{tpu_custom_call.1} parent=1 // pred_region
      _
    $region9: #{tpu_custom_call.1} parent=1 // pred_fallthru
      _
    // Predicated region
    $region10: #{tpu_custom_call.1} parent=1 // pred_check
      _
    $region11: #{tpu_custom_call.1} parent=1 // pred_check_branch
      %16 = sbr.rel (0) target = $region13
    $region12: #{tpu_custom_call.1} parent=1 // pred_region
      _
    $region13: #{tpu_custom_call.1} parent=1 // pred_fallthru
      _
    // Predicated region
    $region14: #{tpu_custom_call.1} parent=1 // pred_check
      _
    $region15: #{tpu_custom_call.1} parent=1 // pred_check_branch
      %18 = sbr.rel (0) target = $region17
    $region16: #{tpu_custom_call.1} parent=1 // pred_region
      _
    $region17: #{tpu_custom_call.1} parent=1 // pred_fallthru
      _
    // Predicated region
    $region18: #{tpu_custom_call.1} parent=1 // pred_check
      _
    $region19: #{tpu_custom_call.1} parent=1 // pred_check_branch
      %20 = sbr.rel (0) target = $region21
    $region20: #{tpu_custom_call.1} parent=1 // pred_region
      _
    $region21: #{tpu_custom_call.1} parent=1 // pred_fallthru
      _
    %v22 = vld [vmem:[%s0] sm:$0xf]
    %v23 = vld [vmem:[%s1] sm:$0xff]
    %v24 = vld [vmem:[%s1 + $0x8] sm:$0xff]
    %v25 = vld [vmem:[%s1 + $0x10] sm:$0xff]
    %v26 = vld [vmem:[%s1 + $0x18] sm:$0xff]
    %v27 = vld [vmem:[%s2] sm:$0x3]
    %v29 = vlaneseq
    %v30 = vshrl.u32 %v29, 7
    %v31 = vsub.s32 0, %v30
    %v32 = vrot.slane %v27, %v31
    %v33 = vlaneseq
    %v34 = vshrl.u32 %v33, 7
    %v35 = vsub.s32 1, %v34
    %v36 = vrot.slane %v27, %v35
    %v43 = vunpack.c.l.b16 %v23
    %v44 = vunpack.c.h.b16 %v23
    %v45 = vunpack.c.l.b16 %v24
    %v46 = vunpack.c.h.b16 %v24
    %v47 = vunpack.c.l.b16 %v25
    %v48 = vunpack.c.h.b16 %v25
    %v49 = vunpack.c.l.b16 %v26
    %v50 = vunpack.c.h.b16 %v26
    %v51 = vpack.c.b16 %v45, %v43
    %v52 = vpack.c.b16 %v46, %v44
    %v53 = vpack.c.b16 %v49, %v47
    %v54 = vpack.c.b16 %v50, %v48
    %vm59 = vcmask 261120
    %v61 = vsel %vm59, %v22, 0
    %63 = vmatprep.subr.bf16.mxu0 %v52
    %64 = vmatpush1.bf16.msra.mxu0 %v51
    %65 = vmatprep.subr.bf16.mxu0 %v54
    %66 = vmatpush1.bf16.msra.mxu0 %v53
    %67 = vmatprep.subr.bf16.mxu0 0
    %68 = vmatpush1.bf16.msra.mxu0 0
    %69 = vmatprep.subr.bf16.mxu0 0
    %70 = vmatpush1.bf16.msra.mxu0 0
    %71 = vmatprep.subr.bf16.mxu0 0
    %72 = vmatpush1.bf16.msra.mxu0 0
    %73 = vmatprep.subr.bf16.mxu0 0
    %74 = vmatpush1.bf16.msra.mxu0 0
    %75 = vmatprep.subr.bf16.mxu0 0
    %76 = vmatpush1.bf16.msra.mxu0 0
    %77 = vmatprep.subr.bf16.mxu0 0
    %78 = vmatpush1.bf16.msra.mxu0 0
    %79 = vmatprep.subr.bf16.mxu0 0
    %80 = vmatpush1.bf16.msra.mxu0 0
    %81 = vmatprep.subr.bf16.mxu0 0
    %82 = vmatpush1.bf16.msra.mxu0 0
    %83 = vmatprep.subr.bf16.mxu0 0
    %84 = vmatpush1.bf16.msra.mxu0 0
    %85 = vmatprep.subr.bf16.mxu0 0
    %86 = vmatpush1.bf16.msra.mxu0 0
    %87 = vmatprep.subr.bf16.mxu0 0
    %88 = vmatpush1.bf16.msra.mxu0 0
    %89 = vmatprep.subr.bf16.mxu0 0
    %90 = vmatpush1.bf16.msra.mxu0 0
    %91 = vmatprep.subr.bf16.mxu0 0
    %92 = vmatpush1.bf16.msra.mxu0 0
    %93 = vmatprep.subr.bf16.mxu0 0
    %94 = vmatpush1.bf16.msra.mxu0 0
    %95 = vmatprep.mubr.bf16.mxu0 0
    %96 = vmatmul.mubr.bf16.gmra.mrb[0].mxu0 %v61
    %v97 = vpop.f32.mrb[0].mxu0
    %v98 = vadd.f32 %v32, %v97
    %v99 = vpop.f32.mrb[0].mxu0
    %v100 = vadd.f32 %v36, %v99
    %v101 = vpop.f32.mrb[0].mxu0
    %v102 = vpop.f32.mrb[0].mxu0
    %103 = vdwg.mxu0
    %v104 = vmax.f32 %v98, 0.0
    %vm105 = vcmask 523264
    %v106 = vsel %vm105, %v100, -inf
    %107 = vmax.xlane.f32.xlu0 %v106
    %v108 = vpop.xlane.xlu0 %107
    %v109 = vsub.f32 %v100, %v108
    %v110 = vmul.f32 %v109, 1.442695
    %v111 = vpow.pop %v110
    %v112 = vsel %vm105, %v111, 0.0
    %113 = vadd.xlane.f32.xlu0 %v112
    %v114 = vpop.xlane.xlu0 %113
    %v115 = vrcp.pop %v114
    %v116 = vmul.f32 %v115, 16.0
    %v117 = vmul.f32 %v111, %v116
    %v118 = vpack.c.bf16 %v104, %v104
    %v119 = vld [vmem:[%s3] sm:$0xf]
    %v120 = vld [vmem:[%s3 + $0x4] sm:$0xf]
    %v121 = vld [vmem:[%s3 + $0x8] sm:$0xf]
    %v122 = vld [vmem:[%s3 + $0xc] sm:$0xf]
    %v123 = vld [vmem:[%s3 + $0x10] sm:$0xf]
    %v124 = vld [vmem:[%s3 + $0x14] sm:$0xf]
    %v125 = vld [vmem:[%s3 + $0x18] sm:$0xf]
    %v126 = vld [vmem:[%s3 + $0x1c] sm:$0xf]
    %v127 = vld [vmem:[%s3 + $0x20] sm:$0xf]
    %v128 = vld [vmem:[%s3 + $0x24] sm:$0xf]
    %v129 = vld [vmem:[%s3 + $0x28] sm:$0xf]
    %v130 = vld [vmem:[%s3 + $0x2c] sm:$0xf]
    %v131 = vld [vmem:[%s3 + $0x30] sm:$0xf]
    %v132 = vld [vmem:[%s3 + $0x34] sm:$0xf]
    %v133 = vld [vmem:[%s3 + $0x38] sm:$0xf]
    %v134 = vld [vmem:[%s3 + $0x3c] sm:$0xf]
    %v135 = vld [vmem:[%s4] sm:$0x1]
    %v137 = vlaneseq
    %v138 = vshrl.u32 %v137, 7
    %v139 = vsub.s32 0, %v138
    %v140 = vrot.slane %v135, %v139
    %v158 = vunpack.c.l.b16 %v119
    %v159 = vunpack.c.l.b16 %v120
    %v160 = vunpack.c.l.b16 %v121
    %v161 = vunpack.c.l.b16 %v122
    %v162 = vunpack.c.l.b16 %v123
    %v163 = vunpack.c.l.b16 %v124
    %v164 = vunpack.c.l.b16 %v125
    %v165 = vunpack.c.l.b16 %v126
    %v166 = vunpack.c.l.b16 %v127
    %v167 = vunpack.c.l.b16 %v128
    %v168 = vunpack.c.l.b16 %v129
    %v169 = vunpack.c.l.b16 %v130
    %v170 = vunpack.c.l.b16 %v131
    %v171 = vunpack.c.l.b16 %v132
    %v172 = vunpack.c.l.b16 %v133
    %v173 = vunpack.c.l.b16 %v134
    %v174 = vpack.c.b16 %v159, %v158
    %v175 = vpack.c.b16 %v161, %v160
    %v176 = vpack.c.b16 %v163, %v162
    %v177 = vpack.c.b16 %v165, %v164
    %v178 = vpack.c.b16 %v167, %v166
    %v179 = vpack.c.b16 %v169, %v168
    %v180 = vpack.c.b16 %v171, %v170
    %v181 = vpack.c.b16 %v173, %v172
    %190 = vmatprep.subr.bf16.mxu0 0
    %191 = vmatpush1.bf16.msra.mxu0 %v174
    %192 = vmatprep.subr.bf16.mxu0 0
    %193 = vmatpush1.bf16.msra.mxu0 %v175
    %194 = vmatprep.subr.bf16.mxu0 0
    %195 = vmatpush1.bf16.msra.mxu0 %v176
    %196 = vmatprep.subr.bf16.mxu0 0
    %197 = vmatpush1.bf16.msra.mxu0 %v177
    %198 = vmatprep.subr.bf16.mxu0 0
    %199 = vmatpush1.bf16.msra.mxu0 %v178
    %200 = vmatprep.subr.bf16.mxu0 0
    %201 = vmatpush1.bf16.msra.mxu0 %v179
    %202 = vmatprep.subr.bf16.mxu0 0
    %203 = vmatpush1.bf16.msra.mxu0 %v180
    %204 = vmatprep.subr.bf16.mxu0 0
    %205 = vmatpush1.bf16.msra.mxu0 %v181
    %206 = vmatprep.subr.bf16.mxu0 0
    %207 = vmatpush1.bf16.msra.mxu0 0
    %208 = vmatprep.subr.bf16.mxu0 0
    %209 = vmatpush1.bf16.msra.mxu0 0
    %210 = vmatprep.subr.bf16.mxu0 0
    %211 = vmatpush1.bf16.msra.mxu0 0
    %212 = vmatprep.subr.bf16.mxu0 0
    %213 = vmatpush1.bf16.msra.mxu0 0
    %214 = vmatprep.subr.bf16.mxu0 0
    %215 = vmatpush1.bf16.msra.mxu0 0
    %216 = vmatprep.subr.bf16.mxu0 0
    %217 = vmatpush1.bf16.msra.mxu0 0
    %218 = vmatprep.subr.bf16.mxu0 0
    %219 = vmatpush1.bf16.msra.mxu0 0
    %220 = vmatprep.subr.bf16.mxu0 0
    %221 = vmatpush1.bf16.msra.mxu0 0
    %222 = vmatprep.mubr.bf16.mxu0 0
    %223 = vmatmul.mubr.bf16.gmra.mrb[0].mxu0 %v118
    %v224 = vpop.f32.mrb[0].mxu0
    %v225 = vadd.f32 %v140, %v224
    %v226 = vpop.f32.mrb[0].mxu0
    %v227 = vpop.f32.mrb[0].mxu0
    %v228 = vpop.f32.mrb[0].mxu0
    %229 = vdwg.mxu0
    %v230 = vmax.f32 %v225, 0.0
    %v231 = vmul.f32 %v117, %v230
    %233 = vrot.lane.b32.xlu0 %v231, 112
    %v234 = vpop.permute.xlu0 %233
    %v236 = vadd.f32 %v231, %v234
    %237 = vrot.lane.b32.xlu0 %v231, 96
    %v238 = vpop.permute.xlu0 %237
    %v240 = vadd.f32 %v236, %v238
    %241 = vrot.lane.b32.xlu0 %v231, 80
    %v242 = vpop.permute.xlu0 %241
    %v244 = vadd.f32 %v240, %v242
    %s245 = scalar_lea.vmem %s0, 4
    %v246 = vld [vmem:[%s245] sm:$0xf]
    %s247 = scalar_lea.vmem %s1, 32
    %v248 = vld [vmem:[%s247] sm:$0xff]
    %v249 = vld [vmem:[%s247 + $0x8] sm:$0xff]
    %v250 = vld [vmem:[%s247 + $0x10] sm:$0xff]
    %v251 = vld [vmem:[%s247 + $0x18] sm:$0xff]
    %s252 = scalar_lea.vmem %s2, 2
    %v253 = vld [vmem:[%s252] sm:$0x3]
    %v255 = vlaneseq
    %v256 = vshrl.u32 %v255, 7
    %v257 = vsub.s32 0, %v256
    %v258 = vrot.slane %v253, %v257
    %v259 = vlaneseq
    %v260 = vshrl.u32 %v259, 7
    %v261 = vsub.s32 1, %v260
    %v262 = vrot.slane %v253, %v261
    %v269 = vunpack.c.l.b16 %v248
    %v270 = vunpack.c.h.b16 %v248
    %v271 = vunpack.c.l.b16 %v249
    %v272 = vunpack.c.h.b16 %v249
    %v273 = vunpack.c.l.b16 %v250
    %v274 = vunpack.c.h.b16 %v250
    %v275 = vunpack.c.l.b16 %v251
    %v276 = vunpack.c.h.b16 %v251
    %v277 = vpack.c.b16 %v271, %v269
    %v278 = vpack.c.b16 %v272, %v270
    %v279 = vpack.c.b16 %v275, %v273
    %v280 = vpack.c.b16 %v276, %v274
    %v286 = vsel %vm59, %v246, 0
    %288 = vmatprep.subr.bf16.mxu0 %v278
    %289 = vmatpush1.bf16.msra.mxu0 %v277
    %290 = vmatprep.subr.bf16.mxu0 %v280
    %291 = vmatpush1.bf16.msra.mxu0 %v279
    %292 = vmatprep.subr.bf16.mxu0 0
    %293 = vmatpush1.bf16.msra.mxu0 0
    %294 = vmatprep.subr.bf16.mxu0 0
    %295 = vmatpush1.bf16.msra.mxu0 0
    %296 = vmatprep.subr.bf16.mxu0 0
    %297 = vmatpush1.bf16.msra.mxu0 0
    %298 = vmatprep.subr.bf16.mxu0 0
    %299 = vmatpush1.bf16.msra.mxu0 0
    %300 = vmatprep.subr.bf16.mxu0 0
    %301 = vmatpush1.bf16.msra.mxu0 0
    %302 = vmatprep.subr.bf16.mxu0 0
    %303 = vmatpush1.bf16.msra.mxu0 0
    %304 = vmatprep.subr.bf16.mxu0 0
    %305 = vmatpush1.bf16.msra.mxu0 0
    %306 = vmatprep.subr.bf16.mxu0 0
    %307 = vmatpush1.bf16.msra.mxu0 0
    %308 = vmatprep.subr.bf16.mxu0 0
    %309 = vmatpush1.bf16.msra.mxu0 0
    %310 = vmatprep.subr.bf16.mxu0 0
    %311 = vmatpush1.bf16.msra.mxu0 0
    %312 = vmatprep.subr.bf16.mxu0 0
    %313 = vmatpush1.bf16.msra.mxu0 0
    %314 = vmatprep.subr.bf16.mxu0 0
    %315 = vmatpush1.bf16.msra.mxu0 0
    %316 = vmatprep.subr.bf16.mxu0 0
    %317 = vmatpush1.bf16.msra.mxu0 0
    %318 = vmatprep.subr.bf16.mxu0 0
    %319 = vmatpush1.bf16.msra.mxu0 0
    %320 = vmatprep.mubr.bf16.mxu0 0
    %321 = vmatmul.mubr.bf16.gmra.mrb[0].mxu0 %v286
    %v322 = vpop.f32.mrb[0].mxu0
    %v323 = vadd.f32 %v258, %v322
    %v324 = vpop.f32.mrb[0].mxu0
    %v325 = vadd.f32 %v262, %v324
    %v326 = vpop.f32.mrb[0].mxu0
    %v327 = vpop.f32.mrb[0].mxu0
    %328 = vdwg.mxu0
    %v329 = vmax.f32 %v323, 0.0
    %v330 = vsel %vm105, %v325, -inf
    %331 = vmax.xlane.f32.xlu0 %v330
    %v332 = vpop.xlane.xlu0 %331
    %v333 = vsub.f32 %v325, %v332
    %v334 = vmul.f32 %v333, 1.442695
    %v335 = vpow.pop %v334
    %v336 = vsel %vm105, %v335, 0.0
    %337 = vadd.xlane.f32.xlu0 %v336
    %v338 = vpop.xlane.xlu0 %337
    %v339 = vrcp.pop %v338
    %v340 = vmul.f32 %v339, 16.0
    %v341 = vmul.f32 %v335, %v340
    %v342 = vpack.c.bf16 %v329, %v329
    %s343 = scalar_lea.vmem %s3, 64
    %v344 = vld [vmem:[%s343] sm:$0xf]
    %v345 = vld [vmem:[%s343 + $0x4] sm:$0xf]
    %v346 = vld [vmem:[%s343 + $0x8] sm:$0xf]
    %v347 = vld [vmem:[%s343 + $0xc] sm:$0xf]
    %v348 = vld [vmem:[%s343 + $0x10] sm:$0xf]
    %v349 = vld [vmem:[%s343 + $0x14] sm:$0xf]
    %v350 = vld [vmem:[%s343 + $0x18] sm:$0xf]
    %v351 = vld [vmem:[%s343 + $0x1c] sm:$0xf]
    %v352 = vld [vmem:[%s343 + $0x20] sm:$0xf]
    %v353 = vld [vmem:[%s343 + $0x24] sm:$0xf]
    %v354 = vld [vmem:[%s343 + $0x28] sm:$0xf]
    %v355 = vld [vmem:[%s343 + $0x2c] sm:$0xf]
    %v356 = vld [vmem:[%s343 + $0x30] sm:$0xf]
    %v357 = vld [vmem:[%s343 + $0x34] sm:$0xf]
    %v358 = vld [vmem:[%s343 + $0x38] sm:$0xf]
    %v359 = vld [vmem:[%s343 + $0x3c] sm:$0xf]
    %s360 = scalar_lea.vmem %s4, 1
    %v361 = vld [vmem:[%s360] sm:$0x1]
    %v363 = vlaneseq
    %v364 = vshrl.u32 %v363, 7
    %v365 = vsub.s32 0, %v364
    %v366 = vrot.slane %v361, %v365
    %v384 = vunpack.c.l.b16 %v344
    %v385 = vunpack.c.l.b16 %v345
    %v386 = vunpack.c.l.b16 %v346
    %v387 = vunpack.c.l.b16 %v347
    %v388 = vunpack.c.l.b16 %v348
    %v389 = vunpack.c.l.b16 %v349
    %v390 = vunpack.c.l.b16 %v350
    %v391 = vunpack.c.l.b16 %v351
    %v392 = vunpack.c.l.b16 %v352
    %v393 = vunpack.c.l.b16 %v353
    %v394 = vunpack.c.l.b16 %v354
    %v395 = vunpack.c.l.b16 %v355
    %v396 = vunpack.c.l.b16 %v356
    %v397 = vunpack.c.l.b16 %v357
    %v398 = vunpack.c.l.b16 %v358
    %v399 = vunpack.c.l.b16 %v359
    %v400 = vpack.c.b16 %v385, %v384
    %v401 = vpack.c.b16 %v387, %v386
    %v402 = vpack.c.b16 %v389, %v388
    %v403 = vpack.c.b16 %v391, %v390
    %v404 = vpack.c.b16 %v393, %v392
    %v405 = vpack.c.b16 %v395, %v394
    %v406 = vpack.c.b16 %v397, %v396
    %v407 = vpack.c.b16 %v399, %v398
    %416 = vmatprep.subr.bf16.mxu0 0
    %417 = vmatpush1.bf16.msra.mxu0 %v400
    %418 = vmatprep.subr.bf16.mxu0 0
    %419 = vmatpush1.bf16.msra.mxu0 %v401
    %420 = vmatprep.subr.bf16.mxu0 0
    %421 = vmatpush1.bf16.msra.mxu0 %v402
    %422 = vmatprep.subr.bf16.mxu0 0
    %423 = vmatpush1.bf16.msra.mxu0 %v403
    %424 = vmatprep.subr.bf16.mxu0 0
    %425 = vmatpush1.bf16.msra.mxu0 %v404
    %426 = vmatprep.subr.bf16.mxu0 0
    %427 = vmatpush1.bf16.msra.mxu0 %v405
    %428 = vmatprep.subr.bf16.mxu0 0
    %429 = vmatpush1.bf16.msra.mxu0 %v406
    %430 = vmatprep.subr.bf16.mxu0 0
    %431 = vmatpush1.bf16.msra.mxu0 %v407
    %432 = vmatprep.subr.bf16.mxu0 0
    %433 = vmatpush1.bf16.msra.mxu0 0
    %434 = vmatprep.subr.bf16.mxu0 0
    %435 = vmatpush1.bf16.msra.mxu0 0
    %436 = vmatprep.subr.bf16.mxu0 0
    %437 = vmatpush1.bf16.msra.mxu0 0
    %438 = vmatprep.subr.bf16.mxu0 0
    %439 = vmatpush1.bf16.msra.mxu0 0
    %440 = vmatprep.subr.bf16.mxu0 0
    %441 = vmatpush1.bf16.msra.mxu0 0
    %442 = vmatprep.subr.bf16.mxu0 0
    %443 = vmatpush1.bf16.msra.mxu0 0
    %444 = vmatprep.subr.bf16.mxu0 0
    %445 = vmatpush1.bf16.msra.mxu0 0
    %446 = vmatprep.subr.bf16.mxu0 0
    %447 = vmatpush1.bf16.msra.mxu0 0
    %448 = vmatprep.mubr.bf16.mxu0 0
    %449 = vmatmul.mubr.bf16.gmra.mrb[0].mxu0 %v342
    %v450 = vpop.f32.mrb[0].mxu0
    %v451 = vadd.f32 %v366, %v450
    %v452 = vpop.f32.mrb[0].mxu0
    %v453 = vpop.f32.mrb[0].mxu0
    %v454 = vpop.f32.mrb[0].mxu0
    %455 = vdwg.mxu0
    %v456 = vmax.f32 %v451, 0.0
    %v457 = vmul.f32 %v341, %v456
    %459 = vrot.lane.b32.xlu0 %v457, 112
    %v460 = vpop.permute.xlu0 %459
    %v462 = vadd.f32 %v457, %v460
    %463 = vrot.lane.b32.xlu0 %v457, 96
    %v464 = vpop.permute.xlu0 %463
    %v466 = vadd.f32 %v462, %v464
    %467 = vrot.lane.b32.xlu0 %v457, 80
    %v468 = vpop.permute.xlu0 %467
    %v470 = vadd.f32 %v466, %v468
    %472 = vrot.lane.b32.xlu0 %v470, 16
    %v473 = vpop.permute.xlu0 %472
    %vm475 = vcmask 130048
    %v476 = vsel %vm475, %v244, %v473
    %477 = vst.msk [vmem:[#allocation2] sm:$0xff] %vm59, %v476
    // Predicated region
    $region22: #{tpu_custom_call.1} parent=1 // pred_check
      _
    $region23: #{tpu_custom_call.1} parent=1 // pred_check_branch
      %479 = sbr.rel (0) target = $region25
    $region24: #{tpu_custom_call.1} parent=1 // pred_region
      %s481 = ssub.s32 128, 128
      %482 = vsyncadd [#allocation3], %s481
      %s484 = sshll.u32 [#allocation2], 4
      %s485 = int_to_ptr.vmem [resolvable:$true] %s484
      %487 = dma.vmem_to_hbm [thread:$0]  %s485, 128, %s5, [#allocation3]
    $region25: #{tpu_custom_call.1} parent=1 // pred_fallthru
      _
    // Predicated region
    $region26: #{tpu_custom_call.1} parent=1 // pred_check
      _
    $region27: #{tpu_custom_call.1} parent=1 // pred_check_branch
      %489 = sbr.rel (0) target = $region29
    $region28: #{tpu_custom_call.1} parent=1 // pred_region
      %490 = dma.done [#allocation3], 128
    $region29: #{tpu_custom_call.1} parent=1 // pred_fallthru
      _
    %491 = vsyncpa [#allocation3], 1

</llo_original>
